<compile_context>
chip_gen: v7x
topology: tpu7x:2x2x1
jax: 0.10.0
libtpu: 0.0.40
codegen_flags: <defaults>
</compile_context>

<pallas_src>
import functools

import jax
import jax.numpy as jnp
from jax.experimental import pallas as pl
from jax.experimental.pallas import tpu as pltpu

_BF16 = jnp.bfloat16
_F32 = jnp.float32


# ----------------------------------------------------------------------------
# small helpers used inside kernels
# ----------------------------------------------------------------------------
def _leaky_relu(y):
    return jnp.where(y > 0.0, y, 0.01 * y)


def _gelu(y):
    # TODO(synk): torch.nn.functional.gelu defaults to the exact erf form;
    # the tanh approximation is used here (Mosaic-friendly, ~1e-3 difference).
    c = 0.7978845608028654
    return 0.5 * y * (1.0 + jnp.tanh(c * (y + 0.044715 * y * y * y)))


def _bdot(a, b):
    """bf16 x bf16 matmul with f32 accumulation on the MXU."""
    return jnp.dot(a.astype(_BF16), b.astype(_BF16), preferred_element_type=_F32)


# ----------------------------------------------------------------------------
# Pallas kernels
# ----------------------------------------------------------------------------
def _trunk_kernel(g_ref, w1_ref, b1_ref, w2_ref, b2_ref, w3_ref, b3_ref, o_ref):
    # FeedForwardNN trunk: 1 -> H -> H -> n_basis, fused into one kernel.
    h = _leaky_relu(_bdot(g_ref[...], w1_ref[...]) + b1_ref[...])
    h = _leaky_relu(_bdot(h, w2_ref[...]) + b2_ref[...])
    o_ref[...] = _bdot(h, w3_ref[...]) + b3_ref[...]


def _branch_kernel(x_ref, d1_ref, w1_ref, b1_ref, d2_ref, w2_ref, b2_ref,
                   w3_ref, b3_ref, ssum_ref, o_ref, *, k, s2):
    # One branch sample: x (S, L) channels-last.
    x = x_ref[...]                                       # (S, L) f32
    # conv1 (k=3, stride=2, pad=1): tap j is a precomputed 0/1 selection matmul
    # (padding rows are zero rows of D), so no im2col tensor ever hits HBM.
    acc = b1_ref[...]
    for j in range(k):
        tap = _bdot(d1_ref[j], x)                        # (s1, L)
        acc = acc + _bdot(tap, w1_ref[j])                # (s1, C)
    h1 = _leaky_relu(acc)
    # conv2 (k=3, stride=2, pad=1)
    acc = b2_ref[...]
    for j in range(k):
        tap = _bdot(d2_ref[j], h1)                       # (s2, C)
        acc = acc + _bdot(tap, w2_ref[j])                # (s2, C)
    h2 = _leaky_relu(acc)
    # flatten + linear head as a sum of per-row matmuls (no in-kernel reshape)
    coeff = b3_ref[...]                                  # (1, L*p)
    for s in range(s2):
        coeff = coeff + _bdot(h2[s:s + 1, :], w3_ref[s])
    # fc0 only consumes the channel mean of the DeepONet output, so the branch
    # directly emits the channel-summed coefficients (the 1/L lives in fc0).
    o_ref[...] = _bdot(coeff, ssum_ref[...])             # (1, p)


def _fno_head_kernel(cbar_ref, basis_ref, g_ref, fc0w_ref, fc0b_ref,
                     cf_ref, sf_ref, ci_ref, si_ref,
                     wr_ref, wi_ref, wc_ref, bc_ref,
                     fc1w_ref, fc1b_ref, fc2w_ref, fc2b_ref,
                     o_ref, hpad_ref, *, n_layers, nx, n_pad):
    # ---- fc0 with the column-averaging weight trick folded in ----------------
    #   x0[n,:] = grid[n]*W[:,0] + (1/L)*(basis[n] . sum_l coeff[l]) * W[:,1] + b
    # (the (B, L, nx) DeepONet tensor is algebraically eliminated; the 1/L
    #  factor is pre-baked into fc0w row 1).
    fc0w = fc0w_ref[...]                                 # (2, W) bf16
    d = _bdot(basis_ref[...], cbar_ref[...])             # (nx, 1)
    x0 = (_bdot(g_ref[...], fc0w[0:1, :])
          + _bdot(d, fc0w[1:2, :])
          + fc0b_ref[...])                               # (nx, W) f32
    # ---- FNO1d_WOR padding done in VMEM (no HBM round trip) ------------------
    hpad_ref[0:nx, :] = x0
    if n_pad > nx:
        hpad_ref[nx:n_pad, :] = jnp.zeros((n_pad - nx, x0.shape[1]), _F32)
    h = hpad_ref[...]                                    # (n_pad, W)
    # ---- spectral + pointwise layers -----------------------------------------
    for l in range(n_layers):
        hb = h.astype(_BF16)
        # truncated rfft (first `modes` modes) expressed as cos/sin matmuls
        xr = jnp.dot(cf_ref[...], hb, preferred_element_type=_F32)   # (m, W)
        xi = -jnp.dot(sf_ref[...], hb, preferred_element_type=_F32)  # (m, W)
        wr = wr_ref[l]                                   # (m, W, W) bf16
        wi = wi_ref[l]
        xrb = xr.astype(_BF16)
        xib = xi.astype(_BF16)
        # complex per-mode channel mixing Y[k] = X[k] @ W[k]
        yr = (jnp.einsum("ki,kio->ko", xrb, wr, preferred_element_type=_F32)
              - jnp.einsum("ki,kio->ko", xib, wi, preferred_element_type=_F32))
        yi = (jnp.einsum("ki,kio->ko", xrb, wi, preferred_element_type=_F32)
              + jnp.einsum("ki,kio->ko", xib, wr, preferred_element_type=_F32))
        # truncated irfft + pointwise (kernel-size-1 Conv1d) skip path
        y = (_bdot(ci_ref[...], yr) - _bdot(si_ref[...], yi)
             + jnp.dot(hb, wc_ref[l], preferred_element_type=_F32)
             + bc_ref[l])
        if l != n_layers - 1:
            y = _gelu(y)
        h = y
    # ---- crop the padding in VMEM, then fused fc1/GELU/fc2 -------------------
    hc = h[0:nx, :]                                      # (nx, W)
    z = _gelu(_bdot(hc, fc1w_ref[...]) + fc1b_ref[...])  # (nx, 128) never hits HBM
    o_ref[...] = _bdot(z, fc2w_ref[...]) + fc2b_ref[...] # (nx, 1)


# ----------------------------------------------------------------------------
# parameter-construction helpers (plain JAX, hoisted to __init__)
# ----------------------------------------------------------------------------
def _dft_matrices(n, modes):
    """Cos/sin matrices so that truncated rfft / irfft become matmuls."""
    k = jnp.arange(modes, dtype=_F32)[:, None]
    nn = jnp.arange(n, dtype=_F32)[None, :]
    ang = 2.0 * jnp.pi * k * nn / n                      # (m, n)
    cf = jnp.cos(ang)
    sf = jnp.sin(ang)
    # TODO(synk): if modes ever reaches n//2 for even n, the Nyquist mode
    # should be scaled 1/n rather than 2/n in the inverse transform.
    scale = jnp.where(jnp.arange(modes) == 0, 1.0, 2.0).astype(_F32) / n
    ci = (cf * scale[:, None]).T                         # (n, m)
    si = (sf * scale[:, None]).T                         # (n, m)
    return cf.astype(_BF16), sf.astype(_BF16), ci.astype(_BF16), si.astype(_BF16)


def _conv_tap_matrices(s_in, k=3, stride=2, pad=1):
    """0/1 selection matrices D[j] with (D[j] @ x)[t] == x_padded[stride*t + j]."""
    s_out = (s_in + 2 * pad - k) // stride + 1
    t = jnp.arange(s_out)[:, None]
    s = jnp.arange(s_in)[None, :]
    mats = [(s == (stride * t + j - pad)).astype(_BF16) for j in range(k)]
    return jnp.stack(mats, axis=0), s_out                # (k, s_out, s_in)


# ----------------------------------------------------------------------------
# model
# ----------------------------------------------------------------------------
class NIORadPermAblPallas:
    """Synthetic-parameter JAX/Pallas reimplementation of NIORadPermAbl.forward."""

    def __init__(self, L, S, nx, n_basis=16, trunk_hidden=32, enc_hidden=16,
                 fno_width=32, fno_modes=8, fno_layers=2, padding_frac=0.25,
                 seed=42):
        self.L, self.S, self.nx = L, S, nx
        self.p = n_basis
        self.modes = fno_modes
        self.n_fno_layers = fno_layers
        self.width = fno_width
        H, C, W = trunk_hidden, enc_hidden, fno_width
        self.H, self.C = H, C

        keys = jax.random.split(jax.random.PRNGKey(seed), 32)

        def nrm(k, shape, scale):
            return (scale * jax.random.normal(k, shape)).astype(_BF16)

        def zrow(n):
            return jnp.zeros((1, n), _F32)

        # trunk FeedForwardNN: 1 -> H -> H -> n_basis
        # TODO(synk): exact FeedForwardNN depth/activation comes from
        # network_properties_trunk (not in excerpt); 2 hidden leaky-relu layers.
        self.tW1 = nrm(keys[0], (1, H), 1.0);                  self.tb1 = zrow(H)
        self.tW2 = nrm(keys[1], (H, H), 1.0 / H ** 0.5);       self.tb2 = zrow(H)
        self.tW3 = nrm(keys[2], (H, n_basis), 1.0 / H ** 0.5); self.tb3 = zrow(n_basis)

        # branch EncoderRad2 (InversionNet-style encoder, synthetic simplification)
        # TODO(synk): exact EncoderRad2 conv stack not in the excerpt; two
        # strided k=3 convs + linear head producing per-channel coefficients.
        self.d1, s1 = _conv_tap_matrices(S)                    # (3, s1, S)
        self.d2, s2 = _conv_tap_matrices(s1)                   # (3, s2, s1)
        self.s2 = s2
        self.eW1 = nrm(keys[3], (3, L, C), 1.0 / (3 * L) ** 0.5); self.eb1 = zrow(C)
        self.eW2 = nrm(keys[4], (3, C, C), 1.0 / (3 * C) ** 0.5); self.eb2 = zrow(C)
        flat = C * s2
        self.eW3 = nrm(keys[5], (s2, C, L * n_basis), 1.0 / flat ** 0.5)
        self.eb3 = zrow(L * n_basis)
        # groups the flat (L, p) coefficients into their channel sum -> (p,)
        self.ssum = jnp.tile(jnp.eye(n_basis, dtype=_F32), (L, 1)).astype(_BF16)

        # fc0 = nn.Linear(1 + 1, width); forward() rebuilds it as
        #   [W[:, 0], repeat(W[:, 1], L) / L] applied to cat(grid, deeponet-out),
        # i.e. only the channel mean of the DeepONet output matters.  Row 1 is
        # pre-divided by L so the kernel can use the channel sum directly.
        fc0W = (1.0 / 2 ** 0.5) * jax.random.normal(keys[6], (W, 2))
        self.fc0w = jnp.stack([fc0W[:, 0], fc0W[:, 1] / L], axis=0).astype(_BF16)
        self.fc0b = (0.1 * jax.random.normal(keys[7], (1, W))).astype(_F32)

        # FNO1d_WOR spectral (complex, stored real/imag) + 1x1-conv weights,
        # stacked over layers so the fused kernel static-loops over them.
        sc = 1.0 / (W * W)
        wr, wi, wc, bc = [], [], [], []
        for l in range(fno_layers):
            k0, k1, k2 = keys[8 + 3 * l], keys[9 + 3 * l], keys[10 + 3 * l]
            wr.append(sc * jax.random.uniform(k0, (fno_modes, W, W)))
            wi.append(sc * jax.random.uniform(k1, (fno_modes, W, W)))
            wc.append((1.0 / W ** 0.5) * jax.random.normal(k2, (W, W)))
            bc.append(jnp.zeros((1, W), _F32))
        self.fnoWr = jnp.stack(wr, 0).astype(_BF16)            # (nl, m, W, W)
        self.fnoWi = jnp.stack(wi, 0).astype(_BF16)
        self.fnoWc = jnp.stack(wc, 0).astype(_BF16)            # (nl, W, W)
        self.fnobc = jnp.stack(bc, 0).astype(_F32)             # (nl, 1, W)

        # FNO projection head: fc1 (W -> 128), fc2 (128 -> 1)
        self.fc1W = nrm(keys[20], (W, 128), 1.0 / W ** 0.5);   self.fc1b = zrow(128)
        self.fc2W = nrm(keys[21], (128, 1), 1.0 / 128 ** 0.5); self.fc2b = zrow(1)

        # DFT matrices for the padded length (hoisted out of __call__)
        self.pad = int(round(nx * padding_frac))
        self.n_pad = nx + self.pad
        self.cf, self.sf, self.ci, self.si = _dft_matrices(self.n_pad, fno_modes)

    # ---------------- pallas_call wrappers -----------------------------------
    def _trunk(self, grid_col):
        nx, p, H = self.nx, self.p, self.H
        return pl.pallas_call(
            _trunk_kernel,
            out_shape=jax.ShapeDtypeStruct((nx, p), _F32),
            grid_spec=pltpu.PrefetchScalarGridSpec(
                num_scalar_prefetch=0,
                grid=(1,),
                in_specs=[
                    pl.BlockSpec((nx, 1), lambda i: (0, 0)),
                    pl.BlockSpec((1, H), lambda i: (0, 0)),
                    pl.BlockSpec((1, H), lambda i: (0, 0)),
                    pl.BlockSpec((H, H), lambda i: (0, 0)),
                    pl.BlockSpec((1, H), lambda i: (0, 0)),
                    pl.BlockSpec((H, p), lambda i: (0, 0)),
                    pl.BlockSpec((1, p), lambda i: (0, 0)),
                ],
                out_specs=pl.BlockSpec((nx, p), lambda i: (0, 0)),
            ),
            compiler_params=pltpu.CompilerParams(
                dimension_semantics=("arbitrary",)),
        )(grid_col, self.tW1, self.tb1, self.tW2, self.tb2, self.tW3, self.tb3)

    def _branch(self, x_sl):
        B = x_sl.shape[0]
        S, L, C, p = self.S, self.L, self.C, self.p
        s1 = self.d1.shape[1]
        s2 = self.s2
        Lp = L * p
        kern = functools.partial(_branch_kernel, k=3, s2=s2)
        return pl.pallas_call(
            kern,
            out_shape=jax.ShapeDtypeStruct((B, 1, p), _F32),
            grid_spec=pltpu.PrefetchScalarGridSpec(
                num_scalar_prefetch=0,
                grid=(B,),
                in_specs=[
                    pl.BlockSpec((None, S, L), lambda i: (i, 0, 0)),
                    pl.BlockSpec((3, s1, S), lambda i: (0, 0, 0)),
                    pl.BlockSpec((3, L, C), lambda i: (0, 0, 0)),
                    pl.BlockSpec((1, C), lambda i: (0, 0)),
                    pl.BlockSpec((3, s2, s1), lambda i: (0, 0, 0)),
                    pl.BlockSpec((3, C, C), lambda i: (0, 0, 0)),
                    pl.BlockSpec((1, C), lambda i: (0, 0)),
                    pl.BlockSpec((s2, C, Lp), lambda i: (0, 0, 0)),
                    pl.BlockSpec((1, Lp), lambda i: (0, 0)),
                    pl.BlockSpec((Lp, p), lambda i: (0, 0)),
                ],
                out_specs=pl.BlockSpec((None, 1, p), lambda i: (i, 0, 0)),
            ),
            compiler_params=pltpu.CompilerParams(
                dimension_semantics=("parallel",)),
        )(x_sl, self.d1, self.eW1, self.eb1, self.d2, self.eW2, self.eb2,
          self.eW3, self.eb3, self.ssum)

    def _fno_head(self, cbar_col, basis, grid_col):
        B = cbar_col.shape[0]
        nx, p, W, m = self.nx, self.p, self.width, self.modes
        nl, n_pad = self.n_fno_layers, self.n_pad
        kern = functools.partial(_fno_head_kernel,
                                 n_layers=nl, nx=nx, n_pad=n_pad)
        return pl.pallas_call(
            kern,
            out_shape=jax.ShapeDtypeStruct((B, nx, 1), _F32),
            grid_spec=pltpu.PrefetchScalarGridSpec(
                num_scalar_prefetch=0,
                grid=(B,),
                in_specs=[
                    pl.BlockSpec((None, p, 1), lambda i: (i, 0, 0)),
                    pl.BlockSpec((nx, p), lambda i: (0, 0)),
                    pl.BlockSpec((nx, 1), lambda i: (0, 0)),
                    pl.BlockSpec((2, W), lambda i: (0, 0)),
                    pl.BlockSpec((1, W), lambda i: (0, 0)),
                    pl.BlockSpec((m, n_pad), lambda i: (0, 0)),
                    pl.BlockSpec((m, n_pad), lambda i: (0, 0)),
                    pl.BlockSpec((n_pad, m), lambda i: (0, 0)),
                    pl.BlockSpec((n_pad, m), lambda i: (0, 0)),
                    pl.BlockSpec((nl, m, W, W), lambda i: (0, 0, 0, 0)),
                    pl.BlockSpec((nl, m, W, W), lambda i: (0, 0, 0, 0)),
                    pl.BlockSpec((nl, W, W), lambda i: (0, 0, 0)),
                    pl.BlockSpec((nl, 1, W), lambda i: (0, 0, 0)),
                    pl.BlockSpec((W, 128), lambda i: (0, 0)),
                    pl.BlockSpec((1, 128), lambda i: (0, 0)),
                    pl.BlockSpec((128, 1), lambda i: (0, 0)),
                    pl.BlockSpec((1, 1), lambda i: (0, 0)),
                ],
                out_specs=pl.BlockSpec((None, nx, 1), lambda i: (i, 0, 0)),
                scratch_shapes=[pltpu.VMEM((n_pad, W), _F32)],
            ),
            compiler_params=pltpu.CompilerParams(
                dimension_semantics=("parallel",)),
        )(cbar_col, basis, grid_col, self.fc0w, self.fc0b,
          self.cf, self.sf, self.ci, self.si,
          self.fnoWr, self.fnoWi, self.fnoWc, self.fnobc,
          self.fc1W, self.fc1b, self.fc2W, self.fc2b)

    # ---------------- forward --------------------------------------------------
    def __call__(self, x, grid):
        B, L, S = x.shape
        nx = grid.shape[0]
        assert (L, S, nx) == (self.L, self.S, self.nx)
        x = x.astype(_F32)
        grid_col = grid.reshape(nx, 1).astype(_F32)

        basis = self._trunk(grid_col)                            # (nx, p)
        # branch works channels-last over the sample axis (x.unsqueeze(2) NCHW)
        cbar = self._branch(jnp.transpose(x, (0, 2, 1)))         # (B, 1, p)
        cbar_col = cbar.reshape(B, self.p, 1)                    # layout-identical view
        return self._fno_head(cbar_col, basis, grid_col)         # (B, nx, 1)


if __name__ == "__main__":
    B, L, S, nx = 2, 4, 16, 16
    key = jax.random.PRNGKey(0)
    kx, _ = jax.random.split(key)
    x = jax.random.normal(kx, (B, L, S), dtype=jnp.float32)
    grid = jnp.linspace(0.0, 1.0, nx, dtype=jnp.float32)

    model = NIORadPermAblPallas(L=L, S=S, nx=nx)
    out = model(x, grid)
    out = jax.block_until_ready(out)
    assert out.shape == (B, nx, 1)
    assert bool(jnp.all(jnp.isfinite(out)))
    print("KERNEL_OK")
</pallas_src>

<mosaic_0001>
module attributes {stable_mosaic.version = 11 : i64} {
  func.func @_trunk_kernel(%arg0: i32, %arg1: memref<16x1xf32, #tpu.memory_space<vmem>>, %arg2: memref<1x32xbf16, #tpu.memory_space<vmem>>, %arg3: memref<1x32xf32, #tpu.memory_space<vmem>>, %arg4: memref<32x32xbf16, #tpu.memory_space<vmem>>, %arg5: memref<1x32xf32, #tpu.memory_space<vmem>>, %arg6: memref<32x16xbf16, #tpu.memory_space<vmem>>, %arg7: memref<1x16xf32, #tpu.memory_space<vmem>>, %arg8: memref<16x16xf32, #tpu.memory_space<vmem>>) attributes {dimension_semantics = [#tpu.dimension_semantics<arbitrary>], iteration_bounds = array<i64: 1>, scalar_prefetch = 0 : i64, scratch_operands = 0 : i64, tpu.core_type = #tpu.core_type<tc>, window_params = [{pipeline_mode = #tpu.pipeline_mode<synchronous>, transform_indices = @transform_0, window_bounds = array<i64: 16, 1>}, {pipeline_mode = #tpu.pipeline_mode<synchronous>, transform_indices = @transform_1, window_bounds = array<i64: 1, 32>}, {pipeline_mode = #tpu.pipeline_mode<synchronous>, transform_indices = @transform_2, window_bounds = array<i64: 1, 32>}, {pipeline_mode = #tpu.pipeline_mode<synchronous>, transform_indices = @transform_3, window_bounds = array<i64: 32, 32>}, {pipeline_mode = #tpu.pipeline_mode<synchronous>, transform_indices = @transform_4, window_bounds = array<i64: 1, 32>}, {pipeline_mode = #tpu.pipeline_mode<synchronous>, transform_indices = @transform_5, window_bounds = array<i64: 32, 16>}, {pipeline_mode = #tpu.pipeline_mode<synchronous>, transform_indices = @transform_6, window_bounds = array<i64: 1, 16>}, {pipeline_mode = #tpu.pipeline_mode<synchronous>, transform_indices = @transform_7, window_bounds = array<i64: 16, 16>}]} {
    %c0 = arith.constant 0 : index
    %c0_0 = arith.constant 0 : index
    %0 = vector.load %arg1[%c0, %c0_0] : memref<16x1xf32, #tpu.memory_space<vmem>>, vector<16x1xf32>
    %c0_1 = arith.constant 0 : index
    %c0_2 = arith.constant 0 : index
    %1 = vector.load %arg2[%c0_1, %c0_2] : memref<1x32xbf16, #tpu.memory_space<vmem>>, vector<1x32xbf16>
    %2 = arith.truncf %0 : vector<16x1xf32> to vector<16x1xbf16>
    %cst = arith.constant dense<0.000000e+00> : vector<16x32xf32>
    %3 = tpu.matmul %2, %1, %cst {dimension_numbers = #tpu.dot_dimension_numbers<[1], [0], [0], [1], [0, 0, 1, 1], [], []>} : vector<16x1xbf16>, vector<1x32xbf16>, vector<16x32xf32> -> vector<16x32xf32>
    %c0_3 = arith.constant 0 : index
    %c0_4 = arith.constant 0 : index
    %4 = vector.load %arg3[%c0_3, %c0_4] : memref<1x32xf32, #tpu.memory_space<vmem>>, vector<1x32xf32>
    %5 = vector.broadcast %4 : vector<1x32xf32> to vector<16x32xf32>
    %6 = arith.addf %3, %5 : vector<16x32xf32>
    %cst_5 = arith.constant 0.000000e+00 : f32
    %7 = vector.broadcast %cst_5 : f32 to vector<16x32xf32>
    %8 = arith.cmpf ogt, %6, %7 : vector<16x32xf32>
    %cst_6 = arith.constant 0.00999999977 : f32
    %9 = vector.broadcast %cst_6 : f32 to vector<16x32xf32>
    %10 = arith.mulf %9, %6 : vector<16x32xf32>
    %11 = arith.select %8, %6, %10 : vector<16x32xi1>, vector<16x32xf32>
    %c0_7 = arith.constant 0 : index
    %c0_8 = arith.constant 0 : index
    %12 = vector.load %arg4[%c0_7, %c0_8] : memref<32x32xbf16, #tpu.memory_space<vmem>>, vector<32x32xbf16>
    %13 = arith.truncf %11 : vector<16x32xf32> to vector<16x32xbf16>
    %cst_9 = arith.constant dense<0.000000e+00> : vector<16x32xf32>
    %14 = tpu.matmul %13, %12, %cst_9 {dimension_numbers = #tpu.dot_dimension_numbers<[1], [0], [0], [1], [0, 0, 1, 1], [], []>} : vector<16x32xbf16>, vector<32x32xbf16>, vector<16x32xf32> -> vector<16x32xf32>
    %c0_10 = arith.constant 0 : index
    %c0_11 = arith.constant 0 : index
    %15 = vector.load %arg5[%c0_10, %c0_11] : memref<1x32xf32, #tpu.memory_space<vmem>>, vector<1x32xf32>
    %16 = vector.broadcast %15 : vector<1x32xf32> to vector<16x32xf32>
    %17 = arith.addf %14, %16 : vector<16x32xf32>
    %cst_12 = arith.constant 0.000000e+00 : f32
    %18 = vector.broadcast %cst_12 : f32 to vector<16x32xf32>
    %19 = arith.cmpf ogt, %17, %18 : vector<16x32xf32>
    %cst_13 = arith.constant 0.00999999977 : f32
    %20 = vector.broadcast %cst_13 : f32 to vector<16x32xf32>
    %21 = arith.mulf %20, %17 : vector<16x32xf32>
    %22 = arith.select %19, %17, %21 : vector<16x32xi1>, vector<16x32xf32>
    %c0_14 = arith.constant 0 : index
    %c0_15 = arith.constant 0 : index
    %23 = vector.load %arg6[%c0_14, %c0_15] : memref<32x16xbf16, #tpu.memory_space<vmem>>, vector<32x16xbf16>
    %24 = arith.truncf %22 : vector<16x32xf32> to vector<16x32xbf16>
    %cst_16 = arith.constant dense<0.000000e+00> : vector<16x16xf32>
    %25 = tpu.matmul %24, %23, %cst_16 {dimension_numbers = #tpu.dot_dimension_numbers<[1], [0], [0], [1], [0, 0, 1, 1], [], []>} : vector<16x32xbf16>, vector<32x16xbf16>, vector<16x16xf32> -> vector<16x16xf32>
    %c0_17 = arith.constant 0 : index
    %c0_18 = arith.constant 0 : index
    %26 = vector.load %arg7[%c0_17, %c0_18] : memref<1x16xf32, #tpu.memory_space<vmem>>, vector<1x16xf32>
    %27 = vector.broadcast %26 : vector<1x16xf32> to vector<16x16xf32>
    %28 = arith.addf %25, %27 : vector<16x16xf32>
    %c0_19 = arith.constant 0 : index
    %c0_20 = arith.constant 0 : index
    %29 = vector.load %arg8[%c0_19, %c0_20] : memref<16x16xf32, #tpu.memory_space<vmem>>, vector<16x16xf32>
    tpu.vector_store %arg8[%c0_19, %c0_20], %28 {strides = array<i32>} : memref<16x16xf32, #tpu.memory_space<vmem>>, vector<16x16xf32>,
    return
  }
  func.func @transform_0(%arg0: i32) -> (i32, i32) {
    %c0_i32 = arith.constant 0 : i32
    %c0_i32_0 = arith.constant 0 : i32
    %c0_i32_1 = arith.constant 0 : i32
    return %c0_i32, %c0_i32_0 : i32, i32
  }
  func.func @transform_1(%arg0: i32) -> (i32, i32) {
    %c0_i32 = arith.constant 0 : i32
    %c0_i32_0 = arith.constant 0 : i32
    %c0_i32_1 = arith.constant 0 : i32
    return %c0_i32, %c0_i32_0 : i32, i32
  }
  func.func @transform_2(%arg0: i32) -> (i32, i32) {
    %c0_i32 = arith.constant 0 : i32
    %c0_i32_0 = arith.constant 0 : i32
    %c0_i32_1 = arith.constant 0 : i32
    return %c0_i32, %c0_i32_0 : i32, i32
  }
  func.func @transform_3(%arg0: i32) -> (i32, i32) {
    %c0_i32 = arith.constant 0 : i32
    %c0_i32_0 = arith.constant 0 : i32
    %c0_i32_1 = arith.constant 0 : i32
    return %c0_i32, %c0_i32_0 : i32, i32
  }
  func.func @transform_4(%arg0: i32) -> (i32, i32) {
    %c0_i32 = arith.constant 0 : i32
    %c0_i32_0 = arith.constant 0 : i32
    %c0_i32_1 = arith.constant 0 : i32
    return %c0_i32, %c0_i32_0 : i32, i32
  }
  func.func @transform_5(%arg0: i32) -> (i32, i32) {
    %c0_i32 = arith.constant 0 : i32
    %c0_i32_0 = arith.constant 0 : i32
    %c0_i32_1 = arith.constant 0 : i32
    return %c0_i32, %c0_i32_0 : i32, i32
  }
  func.func @transform_6(%arg0: i32) -> (i32, i32) {
    %c0_i32 = arith.constant 0 : i32
    %c0_i32_0 = arith.constant 0 : i32
    %c0_i32_1 = arith.constant 0 : i32
    return %c0_i32, %c0_i32_0 : i32, i32
  }
  func.func @transform_7(%arg0: i32) -> (i32, i32) {
    %c0_i32 = arith.constant 0 : i32
    %c0_i32_0 = arith.constant 0 : i32
    %c0_i32_1 = arith.constant 0 : i32
    return %c0_i32, %c0_i32_0 : i32, i32
  }
}

</mosaic_0001>

<llo_original>
// kernel: tpu_custom_call.1
$region0: #{tpu_custom_call.1}
  #allocation0 [shape = 'u32[]', space=smem, size = 0x4, offset = 0x4, fixed_abs, tag = 'smem constant byte address 0x4 - core index']
  #allocation1 [shape = 'u32[144,128]{1,0:T(1,128)}', space=vmem, size = 0x12000, scoped, tag = 'internal scratch']
  %s0 = inlined_call_operand.vmem [shape: f32[16,1], index: 0, kind: input, shape index: {}]
  %s1 = inlined_call_operand.vmem [shape: bf16[1,32], index: 1, kind: input, shape index: {}]
  %s2 = inlined_call_operand.vmem [shape: f32[1,32], index: 2, kind: input, shape index: {}]
  %s3 = inlined_call_operand.vmem [shape: bf16[32,32], index: 3, kind: input, shape index: {}]
  %s4 = inlined_call_operand.vmem [shape: f32[1,32], index: 4, kind: input, shape index: {}]
  %s5 = inlined_call_operand.vmem [shape: bf16[32,16], index: 5, kind: input, shape index: {}]
  %s6 = inlined_call_operand.vmem [shape: f32[1,16], index: 6, kind: input, shape index: {}]
  %s7 = inlined_call_operand.hbm [shape: f32[16,16], index: 7, kind: output, shape index: {}]
  %s8 = sld [smem:[#allocation0]]
  $region38: #{tpu_custom_call.1} parent=0
    _
  %s10 = ssub.s32 1, %s8
  %s11 = scalar_select 0, %s10, %s8
  $region1: #{tpu_custom_call.1} parent=0
    #allocation2 [shape = 'u8[8192]{0}', space=vmem, size = 0x2000, scoped, tag = 'output window, operand 0, single buffered']
    #allocation3 [shape = 's32[1]{0}', space=sflag, size = 0x4, scoped, tag = 'scoped memory for tpu_custom_call.1']
    %12 = vsyncpa [#allocation3], 0
    // Predicated region
    $region2: #{tpu_custom_call.1} parent=1 // pred_check
      _
    $region3: #{tpu_custom_call.1} parent=1 // pred_check_branch
      %14 = sbr.rel (0) target = $region5
    $region4: #{tpu_custom_call.1} parent=1 // pred_region
      _
    $region5: #{tpu_custom_call.1} parent=1 // pred_fallthru
      _
    // Predicated region
    $region6: #{tpu_custom_call.1} parent=1 // pred_check
      _
    $region7: #{tpu_custom_call.1} parent=1 // pred_check_branch
      %16 = sbr.rel (0) target = $region9
    $region8: #{tpu_custom_call.1} parent=1 // pred_region
      _
    $region9: #{tpu_custom_call.1} parent=1 // pred_fallthru
      _
    // Predicated region
    $region10: #{tpu_custom_call.1} parent=1 // pred_check
      _
    $region11: #{tpu_custom_call.1} parent=1 // pred_check_branch
      %18 = sbr.rel (0) target = $region13
    $region12: #{tpu_custom_call.1} parent=1 // pred_region
      _
    $region13: #{tpu_custom_call.1} parent=1 // pred_fallthru
      _
    // Predicated region
    $region14: #{tpu_custom_call.1} parent=1 // pred_check
      _
    $region15: #{tpu_custom_call.1} parent=1 // pred_check_branch
      %20 = sbr.rel (0) target = $region17
    $region16: #{tpu_custom_call.1} parent=1 // pred_region
      _
    $region17: #{tpu_custom_call.1} parent=1 // pred_fallthru
      _
    // Predicated region
    $region18: #{tpu_custom_call.1} parent=1 // pred_check
      _
    $region19: #{tpu_custom_call.1} parent=1 // pred_check_branch
      %22 = sbr.rel (0) target = $region21
    $region20: #{tpu_custom_call.1} parent=1 // pred_region
      _
    $region21: #{tpu_custom_call.1} parent=1 // pred_fallthru
      _
    // Predicated region
    $region22: #{tpu_custom_call.1} parent=1 // pred_check
      _
    $region23: #{tpu_custom_call.1} parent=1 // pred_check_branch
      %24 = sbr.rel (0) target = $region25
    $region24: #{tpu_custom_call.1} parent=1 // pred_region
      _
    $region25: #{tpu_custom_call.1} parent=1 // pred_fallthru
      _
    // Predicated region
    $region26: #{tpu_custom_call.1} parent=1 // pred_check
      _
    $region27: #{tpu_custom_call.1} parent=1 // pred_check_branch
      %26 = sbr.rel (0) target = $region29
    $region28: #{tpu_custom_call.1} parent=1 // pred_region
      _
    $region29: #{tpu_custom_call.1} parent=1 // pred_fallthru
      _
    %v28 = vld [vmem:[%s0] sm:$0xff]
    %v29 = vld [vmem:[%s0 + $0x8] sm:$0xff]
    %v30 = vld [vmem:[%s1] sm:$0x1]
    %v31 = vpack.c.bf16 %v29, %v28
    %v32 = vld [vmem:[%s2] sm:$0x1]
    %v34 = vlaneseq
    %v35 = vshrl.u32 %v34, 7
    %v36 = vsub.s32 0, %v35
    %v37 = vrot.slane %v32, %v36
    %vm39 = vcmask 7168
    %v41 = vsel %vm39, %v31, 0
    %vm43 = vcmask 1040384
    %v44 = vsel 0, 4294967295, 65535
    %v45 = vsel %vm43, %v44, 0
    %v47 = vand.u32 %v30, %v45
    %49 = vmatprep.subr.bf16.mxu0 0
    %50 = vmatpush1.bf16.msra.mxu0 %v47
    %51 = vmatprep.subr.bf16.mxu0 0
    %52 = vmatpush1.bf16.msra.mxu0 0
    %53 = vmatprep.subr.bf16.mxu0 0
    %54 = vmatpush1.bf16.msra.mxu0 0
    %55 = vmatprep.subr.bf16.mxu0 0
    %56 = vmatpush1.bf16.msra.mxu0 0
    %57 = vmatprep.subr.bf16.mxu0 0
    %58 = vmatpush1.bf16.msra.mxu0 0
    %59 = vmatprep.subr.bf16.mxu0 0
    %60 = vmatpush1.bf16.msra.mxu0 0
    %61 = vmatprep.subr.bf16.mxu0 0
    %62 = vmatpush1.bf16.msra.mxu0 0
    %63 = vmatprep.subr.bf16.mxu0 0
    %64 = vmatpush1.bf16.msra.mxu0 0
    %65 = vmatprep.subr.bf16.mxu0 0
    %66 = vmatpush1.bf16.msra.mxu0 0
    %67 = vmatprep.subr.bf16.mxu0 0
    %68 = vmatpush1.bf16.msra.mxu0 0
    %69 = vmatprep.subr.bf16.mxu0 0
    %70 = vmatpush1.bf16.msra.mxu0 0
    %71 = vmatprep.subr.bf16.mxu0 0
    %72 = vmatpush1.bf16.msra.mxu0 0
    %73 = vmatprep.subr.bf16.mxu0 0
    %74 = vmatpush1.bf16.msra.mxu0 0
    %75 = vmatprep.subr.bf16.mxu0 0
    %76 = vmatpush1.bf16.msra.mxu0 0
    %77 = vmatprep.subr.bf16.mxu0 0
    %78 = vmatpush1.bf16.msra.mxu0 0
    %79 = vmatprep.subr.bf16.mxu0 0
    %80 = vmatpush1.bf16.msra.mxu0 0
    %81 = vmatprep.mubr.bf16.mxu0 0
    %82 = vmatmul.mubr.bf16.gmra.mrb[0].mxu0 %v41
    %v83 = vpop.f32.mrb[0].mxu0
    %v84 = vadd.f32 %v37, %v83
    %v85 = vpop.f32.mrb[0].mxu0
    %v86 = vpop.f32.mrb[0].mxu0
    %v87 = vadd.f32 %v37, %v86
    %v88 = vpop.f32.mrb[0].mxu0
    %89 = vdwg.mxu0
    %vm90 = vcmp.gt.f32.partialorder %v84, 0.0
    %vm91 = vcmp.gt.f32.partialorder %v87, 0.0
    %v92 = vmul.f32 %v84, 0.01
    %v93 = vmul.f32 %v87, 0.01
    %v94 = vsel %vm90, %v84, %v92
    %v95 = vsel %vm91, %v87, %v93
    %v96 = vld [vmem:[%s3] sm:$0xf]
    %v97 = vld [vmem:[%s3 + $0x4] sm:$0xf]
    %v98 = vld [vmem:[%s3 + $0x8] sm:$0xf]
    %v99 = vld [vmem:[%s3 + $0xc] sm:$0xf]
    %v100 = vpack.c.bf16 %v95, %v94
    %v101 = vld [vmem:[%s4] sm:$0x1]
    %v103 = vlaneseq
    %v104 = vshrl.u32 %v103, 7
    %v105 = vsub.s32 0, %v104
    %v106 = vrot.slane %v101, %v105
    %v112 = vunpack.c.l.b16 %v96
    %v113 = vunpack.c.l.b16 %v97
    %v114 = vunpack.c.l.b16 %v98
    %v115 = vunpack.c.l.b16 %v99
    %v116 = vpack.c.b16 %v113, %v112
    %v117 = vpack.c.b16 %v115, %v114
    %vm120 = vcmask 261120
    %v122 = vsel %vm120, %v100, 0
    %124 = vmatprep.subr.bf16.mxu0 0
    %125 = vmatpush1.bf16.msra.mxu0 %v116
    %126 = vmatprep.subr.bf16.mxu0 0
    %127 = vmatpush1.bf16.msra.mxu0 %v117
    %128 = vmatprep.subr.bf16.mxu0 0
    %129 = vmatpush1.bf16.msra.mxu0 0
    %130 = vmatprep.subr.bf16.mxu0 0
    %131 = vmatpush1.bf16.msra.mxu0 0
    %132 = vmatprep.subr.bf16.mxu0 0
    %133 = vmatpush1.bf16.msra.mxu0 0
    %134 = vmatprep.subr.bf16.mxu0 0
    %135 = vmatpush1.bf16.msra.mxu0 0
    %136 = vmatprep.subr.bf16.mxu0 0
    %137 = vmatpush1.bf16.msra.mxu0 0
    %138 = vmatprep.subr.bf16.mxu0 0
    %139 = vmatpush1.bf16.msra.mxu0 0
    %140 = vmatprep.subr.bf16.mxu0 0
    %141 = vmatpush1.bf16.msra.mxu0 0
    %142 = vmatprep.subr.bf16.mxu0 0
    %143 = vmatpush1.bf16.msra.mxu0 0
    %144 = vmatprep.subr.bf16.mxu0 0
    %145 = vmatpush1.bf16.msra.mxu0 0
    %146 = vmatprep.subr.bf16.mxu0 0
    %147 = vmatpush1.bf16.msra.mxu0 0
    %148 = vmatprep.subr.bf16.mxu0 0
    %149 = vmatpush1.bf16.msra.mxu0 0
    %150 = vmatprep.subr.bf16.mxu0 0
    %151 = vmatpush1.bf16.msra.mxu0 0
    %152 = vmatprep.subr.bf16.mxu0 0
    %153 = vmatpush1.bf16.msra.mxu0 0
    %154 = vmatprep.subr.bf16.mxu0 0
    %155 = vmatpush1.bf16.msra.mxu0 0
    %156 = vmatprep.mubr.bf16.mxu0 0
    %157 = vmatmul.mubr.bf16.gmra.mrb[0].mxu0 %v122
    %v158 = vpop.f32.mrb[0].mxu0
    %v159 = vadd.f32 %v106, %v158
    %v160 = vpop.f32.mrb[0].mxu0
    %v161 = vpop.f32.mrb[0].mxu0
    %v162 = vadd.f32 %v106, %v161
    %v163 = vpop.f32.mrb[0].mxu0
    %164 = vdwg.mxu0
    %vm165 = vcmp.gt.f32.partialorder %v159, 0.0
    %vm166 = vcmp.gt.f32.partialorder %v162, 0.0
    %v167 = vmul.f32 %v159, 0.01
    %v168 = vmul.f32 %v162, 0.01
    %v169 = vsel %vm165, %v159, %v167
    %v170 = vsel %vm166, %v162, %v168
    %v171 = vld [vmem:[%s5] sm:$0xf]
    %v172 = vld [vmem:[%s5 + $0x4] sm:$0xf]
    %v173 = vld [vmem:[%s5 + $0x8] sm:$0xf]
    %v174 = vld [vmem:[%s5 + $0xc] sm:$0xf]
    %v175 = vpack.c.bf16 %v170, %v169
    %v176 = vld [vmem:[%s6] sm:$0x1]
    %v178 = vlaneseq
    %v179 = vshrl.u32 %v178, 7
    %v180 = vsub.s32 0, %v179
    %v181 = vrot.slane %v176, %v180
    %v187 = vunpack.c.l.b16 %v171
    %v188 = vunpack.c.l.b16 %v172
    %v189 = vunpack.c.l.b16 %v173
    %v190 = vunpack.c.l.b16 %v174
    %v191 = vpack.c.b16 %v188, %v187
    %v192 = vpack.c.b16 %v190, %v189
    %v196 = vsel %vm120, %v175, 0
    %198 = vmatprep.subr.bf16.mxu0 0
    %199 = vmatpush1.bf16.msra.mxu0 %v191
    %200 = vmatprep.subr.bf16.mxu0 0
    %201 = vmatpush1.bf16.msra.mxu0 %v192
    %202 = vmatprep.subr.bf16.mxu0 0
    %203 = vmatpush1.bf16.msra.mxu0 0
    %204 = vmatprep.subr.bf16.mxu0 0
    %205 = vmatpush1.bf16.msra.mxu0 0
    %206 = vmatprep.subr.bf16.mxu0 0
    %207 = vmatpush1.bf16.msra.mxu0 0
    %208 = vmatprep.subr.bf16.mxu0 0
    %209 = vmatpush1.bf16.msra.mxu0 0
    %210 = vmatprep.subr.bf16.mxu0 0
    %211 = vmatpush1.bf16.msra.mxu0 0
    %212 = vmatprep.subr.bf16.mxu0 0
    %213 = vmatpush1.bf16.msra.mxu0 0
    %214 = vmatprep.subr.bf16.mxu0 0
    %215 = vmatpush1.bf16.msra.mxu0 0
    %216 = vmatprep.subr.bf16.mxu0 0
    %217 = vmatpush1.bf16.msra.mxu0 0
    %218 = vmatprep.subr.bf16.mxu0 0
    %219 = vmatpush1.bf16.msra.mxu0 0
    %220 = vmatprep.subr.bf16.mxu0 0
    %221 = vmatpush1.bf16.msra.mxu0 0
    %222 = vmatprep.subr.bf16.mxu0 0
    %223 = vmatpush1.bf16.msra.mxu0 0
    %224 = vmatprep.subr.bf16.mxu0 0
    %225 = vmatpush1.bf16.msra.mxu0 0
    %226 = vmatprep.subr.bf16.mxu0 0
    %227 = vmatpush1.bf16.msra.mxu0 0
    %228 = vmatprep.subr.bf16.mxu0 0
    %229 = vmatpush1.bf16.msra.mxu0 0
    %230 = vmatprep.mubr.bf16.mxu0 0
    %231 = vmatmul.mubr.bf16.gmra.mrb[0].mxu0 %v196
    %v232 = vpop.f32.mrb[0].mxu0
    %v233 = vadd.f32 %v181, %v232
    %v234 = vpop.f32.mrb[0].mxu0
    %v235 = vpop.f32.mrb[0].mxu0
    %v236 = vadd.f32 %v181, %v235
    %v237 = vpop.f32.mrb[0].mxu0
    %238 = vdwg.mxu0
    %vm239 = vcmask 130048
    %240 = vst.msk [vmem:[#allocation2] sm:$0xff] %vm239, %v233
    %241 = vst.msk [vmem:[#allocation2 + $0x8] sm:$0xff] %vm239, %v236
    // Predicated region
    $region30: #{tpu_custom_call.1} parent=1 // pred_check
      _
    $region31: #{tpu_custom_call.1} parent=1 // pred_check_branch
      %243 = sbr.rel (0) target = $region33
    $region32: #{tpu_custom_call.1} parent=1 // pred_region
      %s245 = ssub.s32 256, 256
      %246 = vsyncadd [#allocation3], %s245
      %s247 = sshll.u32 [#allocation2], 4
      %s248 = int_to_ptr.vmem [resolvable:$true] %s247
      %253 = dma.vmem_to_hbm [thread:$0]  %s248, 256, %s7, [#allocation3], 128, 128, 8
    $region33: #{tpu_custom_call.1} parent=1 // pred_fallthru
      _
    // Predicated region
    $region34: #{tpu_custom_call.1} parent=1 // pred_check
      _
    $region35: #{tpu_custom_call.1} parent=1 // pred_check_branch
      %255 = sbr.rel (0) target = $region37
    $region36: #{tpu_custom_call.1} parent=1 // pred_region
      %256 = dma.done [#allocation3], 256
    $region37: #{tpu_custom_call.1} parent=1 // pred_fallthru
      _
    %257 = vsyncpa [#allocation3], 1

</llo_original>
